<compile_context>
chip_gen: v7x
topology: tpu7x:2x2x1
jax: 0.10.0
libtpu: 0.0.40
codegen_flags: <defaults>
</compile_context>

<pallas_src>
import functools

import jax
import jax.numpy as jnp
from jax.experimental import pallas as pl
from jax.experimental.pallas import tpu as pltpu


def _discriminator_kernel(x_ref, wcomb_ref, wh_ref, bcell_ref, wout_ref,
                          bout_ref, pred_ref, *, H, rw_len, n_chains,
                          matmul_dtype):
    """One batch-tile of the Discriminator forward.

    x_ref:     (rw_len, TB, N)  time-major input walks for this batch tile
    wcomb_ref: (N, 4H)          W_down^T @ W_x^T (x path folded offline)
    wh_ref:    (H, 4H)          hidden half of the LSTM cell weight^T
    bcell_ref: (1, 4H)          cell bias with +1.0 baked into the forget cols
    wout_ref:  (1, H)           lin_out weight (torch layout)
    bout_ref:  (1,)             lin_out bias (SMEM scalar)
    pred_ref:  (1, TB)          lane-dense logits row for this tile
    """
    TB = x_ref.shape[1]
    N = x_ref.shape[2]
    low_precision = jnp.dtype(matmul_dtype) != jnp.dtype(jnp.float32)

    # ---- Hoisted input projection for ALL time steps in one MXU pass. ----
    # TB % 8 == 0, so collapsing (rw_len, TB) into the sublane axis does not
    # cross (8, 128) tiles (no materialized copy).
    x_all = x_ref[...].reshape(rw_len * TB, N)
    wcomb = wcomb_ref[...]
    if low_precision:
        x_all = x_all.astype(matmul_dtype)
        wcomb = wcomb.astype(matmul_dtype)
    gx = jnp.dot(x_all, wcomb, preferred_element_type=jnp.float32)
    gx = gx + bcell_ref[...]                       # (rw_len*TB, 4H), bias fused once

    wh = wh_ref[...]
    if low_precision:
        wh = wh.astype(matmul_dtype)

    # ---- Serial LSTM recurrence. ----
    # TB is split into `n_chains` independent sub-chains whose steps live in
    # the same fully-unrolled basic block, so the scheduler can overlap chain
    # A's h @ W_h matmul with chain B's sigmoid/tanh (hides MXU/EUP latency).
    SB = TB // n_chains
    hs = [jnp.zeros((SB, H), jnp.float32) for _ in range(n_chains)]
    cs = [jnp.zeros((SB, H), jnp.float32) for _ in range(n_chains)]

    for t in range(rw_len):
        for j in range(n_chains):
            base = t * TB + j * SB                 # static, sublane-aligned slice
            h_mm = hs[j].astype(matmul_dtype) if low_precision else hs[j]
            gates = gx[base:base + SB, :] + jnp.dot(
                h_mm, wh, preferred_element_type=jnp.float32)   # (SB, 4H)
            # 3 EUP pushes per step (2 full-width + tanh(c)) instead of 5
            # per-gate pushes.  torch chunk order: (in, cell, forget, out);
            # the forget "+1.0" is already baked into the bias.
            sig = jax.nn.sigmoid(gates)
            th = jnp.tanh(gates)
            ingate = sig[:, 0:H]
            cellgate = th[:, H:2 * H]
            forgetgate = sig[:, 2 * H:3 * H]
            outgate = sig[:, 3 * H:4 * H]
            cs[j] = cs[j] * forgetgate + ingate * cellgate
            hs[j] = outgate * jnp.tanh(cs[j])

    h = hs[0] if n_chains == 1 else jnp.concatenate(hs, axis=0)   # (TB, H)

    # ---- lin_out head: one small MXU pass producing a lane-dense (1, TB)
    # logits row (unmasked store), instead of a (TB, 1) masked-store column.
    pred_row = jnp.einsum('oh,bh->ob', wout_ref[...], h,
                          preferred_element_type=jnp.float32)     # (1, TB)
    pred_ref[...] = pred_row + bout_ref[0]


def _round_up(x, m):
    return (x + m - 1) // m * m


def _pick_num_chains(TB):
    """Number of independent recurrence sub-chains (each >= 8 sublane rows)."""
    for n in (4, 2):
        if TB % (8 * n) == 0 and TB // n >= 8:
            return n
    return 1


def discriminator_forward(x, kernel_params, *, H, rw_len, batch_tile=None,
                          num_chains=None, matmul_dtype=jnp.float32,
                          vmem_limit_bytes=None):
    """x: (B, rw_len, N) float32.  Returns (B, 1) float32."""
    B, L, N = x.shape
    assert L == rw_len
    wcomb, wh_t, b_cell_fused, wout_row, b_out = kernel_params

    # ---- Batch tiling -----------------------------------------------------
    # Rows padded to the f32 sublane multiple (8) so every (TB, ...) operand
    # fills whole sublanes / MXU result rows.  Auto policy:
    #   * B_pad <= 256 : one maximal tile (single-TC v5e/v6e: fewer grid steps
    #     = less per-step overhead, full MXU/EUP occupancy).
    #   * B_pad  > 256 : 256-row tiles (multiple of 128 keeps the (1, TB)
    #     output block lane-aligned) -> grid >= 2, so the "parallel" grid axis
    #     shards the batch across v7x's two TensorCores.
    if batch_tile is None:
        B_pad = _round_up(B, 8)
        if B_pad <= 256:
            TB = B_pad
        else:
            TB = 256
            B_pad = _round_up(B_pad, TB)
    else:
        TB = batch_tile
        assert TB % 8 == 0, "batch_tile must be a multiple of 8 (f32 sublane)"
        B_pad = _round_up(B, TB)
        if B_pad != TB:
            assert TB % 128 == 0, (
                "multi-program batch_tile must be a multiple of 128 so the "
                "(1, TB) output block stays lane-aligned")
    grid = (B_pad // TB,)

    if num_chains is None:
        num_chains = _pick_num_chains(TB)
    assert TB % num_chains == 0 and (TB // num_chains) % 8 == 0

    # ---- Layout plumbing (wrapper side, free) ------------------------------
    if B_pad != B:
        x = jnp.pad(x, ((0, B_pad - B), (0, 0), (0, 0)))
    x_tm = jnp.transpose(x, (1, 0, 2))            # (rw_len, B_pad, N) time-major

    cp_kwargs = dict(dimension_semantics=("parallel",))
    if vmem_limit_bytes is not None:              # e.g. needed on v5e (16 MiB
        cp_kwargs["vmem_limit_bytes"] = vmem_limit_bytes   # scoped default) for huge tiles
    compiler_params = pltpu.CompilerParams(**cp_kwargs)

    vmem = pltpu.MemorySpace.VMEM
    kernel = functools.partial(_discriminator_kernel, H=H, rw_len=rw_len,
                               n_chains=num_chains, matmul_dtype=matmul_dtype)
    out = pl.pallas_call(
        kernel,
        out_shape=jax.ShapeDtypeStruct((1, B_pad), jnp.float32),
        grid=grid,
        in_specs=[
            pl.BlockSpec((rw_len, TB, N), lambda b: (0, b, 0),
                         memory_space=vmem),
            pl.BlockSpec((N, 4 * H), lambda b: (0, 0), memory_space=vmem),
            pl.BlockSpec((H, 4 * H), lambda b: (0, 0), memory_space=vmem),
            pl.BlockSpec((1, 4 * H), lambda b: (0, 0), memory_space=vmem),
            pl.BlockSpec((1, H), lambda b: (0, 0), memory_space=vmem),
            pl.BlockSpec(memory_space=pltpu.MemorySpace.SMEM),
        ],
        out_specs=pl.BlockSpec((1, TB), lambda b: (0, b), memory_space=vmem),
        compiler_params=compiler_params,
    )(x_tm, wcomb, wh_t, b_cell_fused, wout_row, b_out)

    return out.reshape(B_pad, 1)[:B]


def xavier_uniform(key, shape):
    """torch.nn.init.xavier_uniform_ for a (fan_out, fan_in) Linear weight."""
    fan_out, fan_in = shape
    bound = (6.0 / (fan_in + fan_out)) ** 0.5
    return jax.random.uniform(key, shape, jnp.float32, -bound, bound)


def init_params(key, H_inputs, H, N):
    """Raw torch-equivalent parameters (pre-transposed where useful)."""
    k1, k2, k3 = jax.random.split(key, 3)
    w_down = xavier_uniform(k1, (H_inputs, N))          # torch layout (out, in)
    w_cell = xavier_uniform(k2, (4 * H, H_inputs + H))
    w_out = xavier_uniform(k3, (1, H))
    b_cell = jnp.zeros((1, 4 * H), jnp.float32)
    b_out = jnp.zeros((1,), jnp.float32)                # 1-D: 4 B of SMEM, no padded tile

    wdown_t = w_down.T                                  # (N, H_inputs)
    w_cell_t = w_cell.T                                 # (H_inputs+H, 4H)
    wx_t = w_cell_t[:H_inputs, :]                       # (H_inputs, 4H)
    wh_t = w_cell_t[H_inputs:, :]                       # (H, 4H)
    return (wdown_t, wx_t, wh_t, b_cell, w_out, b_out)


def prepare_kernel_params(params, *, H):
    """Fold W_down into W_x and bake the forget-gate +1.0 into the bias."""
    wdown_t, wx_t, wh_t, b_cell, w_out, b_out = params
    wcomb = wdown_t @ wx_t                              # (N, 4H)
    b_cell_fused = b_cell.at[:, 2 * H:3 * H].add(1.0)   # forget bias baked in
    return (wcomb, wh_t, b_cell_fused, w_out, b_out)


def reference_forward(x, params, *, H, rw_len):
    """Pure-JAX reference mirroring the torch code (unfused)."""
    wdown_t, wx_t, wh_t, b_cell, w_out, b_out = params
    B, _, N = x.shape
    xa = x.reshape(-1, N) @ wdown_t
    xa = xa.reshape(B, rw_len, -1)
    h = jnp.zeros((B, H), jnp.float32)
    c = jnp.zeros((B, H), jnp.float32)
    for i in range(rw_len):
        gates = xa[:, i, :] @ wx_t + h @ wh_t + b_cell
        ingate = jax.nn.sigmoid(gates[:, 0:H])
        cellgate = jnp.tanh(gates[:, H:2 * H])
        forgetgate = jax.nn.sigmoid(gates[:, 2 * H:3 * H] + 1.0)
        outgate = jax.nn.sigmoid(gates[:, 3 * H:4 * H])
        c = c * forgetgate + ingate * cellgate
        h = outgate * jnp.tanh(c)
    return h @ w_out.T + b_out


if __name__ == "__main__":
    # Small shapes consistent with the module's forward:
    #   N (nodes) = 16, H_inputs = 8, H (hidden) = 32, rw_len = 8, batch = 2
    B, rw_len, N, H_inputs, H = 2, 8, 16, 8, 32

    key = jax.random.PRNGKey(0)
    k_x, k_p = jax.random.split(key)
    x = jax.random.normal(k_x, (B, rw_len, N), dtype=jnp.float32)
    params = init_params(k_p, H_inputs, H, N)
    kparams = prepare_kernel_params(params, H=H)

    pred = discriminator_forward(x, kparams, H=H, rw_len=rw_len)
    pred = jax.block_until_ready(pred)
    ref = reference_forward(x, params, H=H, rw_len=rw_len)
    assert pred.shape == (B, 1)
    assert jnp.allclose(pred, ref, atol=1e-5, rtol=1e-5), (pred, ref)

    # Also exercise the multi-program / multi-chain path (grid >= 2, 4 chains).
    B2 = 512
    x2 = jax.random.normal(jax.random.PRNGKey(1), (B2, rw_len, N), jnp.float32)
    pred2 = discriminator_forward(x2, kparams, H=H, rw_len=rw_len)
    pred2 = jax.block_until_ready(pred2)
    ref2 = reference_forward(x2, params, H=H, rw_len=rw_len)
    assert pred2.shape == (B2, 1)
    assert jnp.allclose(pred2, ref2, atol=1e-4, rtol=1e-4)

    print("KERNEL_OK")
</pallas_src>

<mosaic_0001>
module attributes {stable_mosaic.version = 11 : i64} {
  func.func @_discriminator_kernel(%arg0: i32, %arg1: memref<8x8x16xf32, #tpu.memory_space<vmem>>, %arg2: memref<16x128xf32, #tpu.memory_space<vmem>>, %arg3: memref<32x128xf32, #tpu.memory_space<vmem>>, %arg4: memref<1x128xf32, #tpu.memory_space<vmem>>, %arg5: memref<1x32xf32, #tpu.memory_space<vmem>>, %arg6: memref<1xf32, #tpu.memory_space<smem>>, %arg7: memref<1x8xf32, #tpu.memory_space<vmem>>) attributes {dimension_semantics = [#tpu.dimension_semantics<parallel>], iteration_bounds = array<i64: 1>, scalar_prefetch = 0 : i64, scratch_operands = 0 : i64, tpu.core_type = #tpu.core_type<tc>, window_params = [{transform_indices = @transform_0, window_bounds = array<i64: 8, 8, 16>}, {pipeline_mode = #tpu.pipeline_mode<synchronous>, transform_indices = @transform_1, window_bounds = array<i64: 16, 128>}, {pipeline_mode = #tpu.pipeline_mode<synchronous>, transform_indices = @transform_2, window_bounds = array<i64: 32, 128>}, {pipeline_mode = #tpu.pipeline_mode<synchronous>, transform_indices = @transform_3, window_bounds = array<i64: 1, 128>}, {pipeline_mode = #tpu.pipeline_mode<synchronous>, transform_indices = @transform_4, window_bounds = array<i64: 1, 32>}, {transform_indices = @transform_5, window_bounds = array<i64: 1>}, {transform_indices = @transform_6, window_bounds = array<i64: 1, 8>}]} {
    %c0 = arith.constant 0 : index
    %c0_0 = arith.constant 0 : index
    %c0_1 = arith.constant 0 : index
    %0 = vector.load %arg1[%c0, %c0_0, %c0_1] : memref<8x8x16xf32, #tpu.memory_space<vmem>>, vector<8x8x16xf32>
    %1 = vector.shape_cast %0 : vector<8x8x16xf32> to vector<64x16xf32>
    %c0_2 = arith.constant 0 : index
    %c0_3 = arith.constant 0 : index
    %2 = vector.load %arg2[%c0_2, %c0_3] : memref<16x128xf32, #tpu.memory_space<vmem>>, vector<16x128xf32>
    %cst = arith.constant dense<0.000000e+00> : vector<64x128xf32>
    %3 = tpu.matmul %1, %2, %cst {dimension_numbers = #tpu.dot_dimension_numbers<[1], [0], [0], [1], [0, 0, 1, 1], [], []>} : vector<64x16xf32>, vector<16x128xf32>, vector<64x128xf32> -> vector<64x128xf32>
    %c0_4 = arith.constant 0 : index
    %c0_5 = arith.constant 0 : index
    %4 = vector.load %arg4[%c0_4, %c0_5] : memref<1x128xf32, #tpu.memory_space<vmem>>, vector<1x128xf32>
    %5 = vector.broadcast %4 : vector<1x128xf32> to vector<64x128xf32>
    %6 = arith.addf %3, %5 : vector<64x128xf32>
    %c0_6 = arith.constant 0 : index
    %c0_7 = arith.constant 0 : index
    %7 = vector.load %arg3[%c0_6, %c0_7] : memref<32x128xf32, #tpu.memory_space<vmem>>, vector<32x128xf32>
    %cst_8 = arith.constant 0.000000e+00 : f32
    %8 = vector.broadcast %cst_8 : f32 to vector<8x32xf32>
    %cst_9 = arith.constant 0.000000e+00 : f32
    %9 = vector.broadcast %cst_9 : f32 to vector<8x32xf32>
    %10 = vector.extract_strided_slice %6 {offsets = [0, 0], sizes = [8, 128], strides = [1, 1]} : vector<64x128xf32> to vector<8x128xf32>
    %cst_10 = arith.constant dense<0.000000e+00> : vector<8x128xf32>
    %11 = tpu.matmul %8, %7, %cst_10 {dimension_numbers = #tpu.dot_dimension_numbers<[1], [0], [0], [1], [0, 0, 1, 1], [], []>} : vector<8x32xf32>, vector<32x128xf32>, vector<8x128xf32> -> vector<8x128xf32>
    %12 = arith.addf %10, %11 : vector<8x128xf32>
    %13 = arith.negf %12 : vector<8x128xf32>
    %14 = math.exp %13 : vector<8x128xf32>
    %cst_11 = arith.constant 1.000000e+00 : f32
    %15 = vector.broadcast %cst_11 : f32 to vector<8x128xf32>
    %16 = arith.addf %15, %14 : vector<8x128xf32>
    %17 = arith.divf %15, %16 : vector<8x128xf32>
    %18 = math.tanh %12 : vector<8x128xf32>
    %19 = vector.extract_strided_slice %17 {offsets = [0, 0], sizes = [8, 32], strides = [1, 1]} : vector<8x128xf32> to vector<8x32xf32>
    %20 = vector.extract_strided_slice %18 {offsets = [0, 32], sizes = [8, 32], strides = [1, 1]} : vector<8x128xf32> to vector<8x32xf32>
    %21 = vector.extract_strided_slice %17 {offsets = [0, 64], sizes = [8, 32], strides = [1, 1]} : vector<8x128xf32> to vector<8x32xf32>
    %22 = vector.extract_strided_slice %17 {offsets = [0, 96], sizes = [8, 32], strides = [1, 1]} : vector<8x128xf32> to vector<8x32xf32>
    %23 = arith.mulf %9, %21 : vector<8x32xf32>
    %24 = arith.mulf %19, %20 : vector<8x32xf32>
    %25 = arith.addf %23, %24 : vector<8x32xf32>
    %26 = math.tanh %25 : vector<8x32xf32>
    %27 = arith.mulf %22, %26 : vector<8x32xf32>
    %28 = vector.extract_strided_slice %6 {offsets = [8, 0], sizes = [8, 128], strides = [1, 1]} : vector<64x128xf32> to vector<8x128xf32>
    %cst_12 = arith.constant dense<0.000000e+00> : vector<8x128xf32>
    %29 = tpu.matmul %27, %7, %cst_12 {dimension_numbers = #tpu.dot_dimension_numbers<[1], [0], [0], [1], [0, 0, 1, 1], [], []>} : vector<8x32xf32>, vector<32x128xf32>, vector<8x128xf32> -> vector<8x128xf32>
    %30 = arith.addf %28, %29 : vector<8x128xf32>
    %31 = arith.negf %30 : vector<8x128xf32>
    %32 = math.exp %31 : vector<8x128xf32>
    %cst_13 = arith.constant 1.000000e+00 : f32
    %33 = vector.broadcast %cst_13 : f32 to vector<8x128xf32>
    %34 = arith.addf %33, %32 : vector<8x128xf32>
    %35 = arith.divf %33, %34 : vector<8x128xf32>
    %36 = math.tanh %30 : vector<8x128xf32>
    %37 = vector.extract_strided_slice %35 {offsets = [0, 0], sizes = [8, 32], strides = [1, 1]} : vector<8x128xf32> to vector<8x32xf32>
    %38 = vector.extract_strided_slice %36 {offsets = [0, 32], sizes = [8, 32], strides = [1, 1]} : vector<8x128xf32> to vector<8x32xf32>
    %39 = vector.extract_strided_slice %35 {offsets = [0, 64], sizes = [8, 32], strides = [1, 1]} : vector<8x128xf32> to vector<8x32xf32>
    %40 = vector.extract_strided_slice %35 {offsets = [0, 96], sizes = [8, 32], strides = [1, 1]} : vector<8x128xf32> to vector<8x32xf32>
    %41 = arith.mulf %25, %39 : vector<8x32xf32>
    %42 = arith.mulf %37, %38 : vector<8x32xf32>
    %43 = arith.addf %41, %42 : vector<8x32xf32>
    %44 = math.tanh %43 : vector<8x32xf32>
    %45 = arith.mulf %40, %44 : vector<8x32xf32>
    %46 = vector.extract_strided_slice %6 {offsets = [16, 0], sizes = [8, 128], strides = [1, 1]} : vector<64x128xf32> to vector<8x128xf32>
    %cst_14 = arith.constant dense<0.000000e+00> : vector<8x128xf32>
    %47 = tpu.matmul %45, %7, %cst_14 {dimension_numbers = #tpu.dot_dimension_numbers<[1], [0], [0], [1], [0, 0, 1, 1], [], []>} : vector<8x32xf32>, vector<32x128xf32>, vector<8x128xf32> -> vector<8x128xf32>
    %48 = arith.addf %46, %47 : vector<8x128xf32>
    %49 = arith.negf %48 : vector<8x128xf32>
    %50 = math.exp %49 : vector<8x128xf32>
    %cst_15 = arith.constant 1.000000e+00 : f32
    %51 = vector.broadcast %cst_15 : f32 to vector<8x128xf32>
    %52 = arith.addf %51, %50 : vector<8x128xf32>
    %53 = arith.divf %51, %52 : vector<8x128xf32>
    %54 = math.tanh %48 : vector<8x128xf32>
    %55 = vector.extract_strided_slice %53 {offsets = [0, 0], sizes = [8, 32], strides = [1, 1]} : vector<8x128xf32> to vector<8x32xf32>
    %56 = vector.extract_strided_slice %54 {offsets = [0, 32], sizes = [8, 32], strides = [1, 1]} : vector<8x128xf32> to vector<8x32xf32>
    %57 = vector.extract_strided_slice %53 {offsets = [0, 64], sizes = [8, 32], strides = [1, 1]} : vector<8x128xf32> to vector<8x32xf32>
    %58 = vector.extract_strided_slice %53 {offsets = [0, 96], sizes = [8, 32], strides = [1, 1]} : vector<8x128xf32> to vector<8x32xf32>
    %59 = arith.mulf %43, %57 : vector<8x32xf32>
    %60 = arith.mulf %55, %56 : vector<8x32xf32>
    %61 = arith.addf %59, %60 : vector<8x32xf32>
    %62 = math.tanh %61 : vector<8x32xf32>
    %63 = arith.mulf %58, %62 : vector<8x32xf32>
    %64 = vector.extract_strided_slice %6 {offsets = [24, 0], sizes = [8, 128], strides = [1, 1]} : vector<64x128xf32> to vector<8x128xf32>
    %cst_16 = arith.constant dense<0.000000e+00> : vector<8x128xf32>
    %65 = tpu.matmul %63, %7, %cst_16 {dimension_numbers = #tpu.dot_dimension_numbers<[1], [0], [0], [1], [0, 0, 1, 1], [], []>} : vector<8x32xf32>, vector<32x128xf32>, vector<8x128xf32> -> vector<8x128xf32>
    %66 = arith.addf %64, %65 : vector<8x128xf32>
    %67 = arith.negf %66 : vector<8x128xf32>
    %68 = math.exp %67 : vector<8x128xf32>
    %cst_17 = arith.constant 1.000000e+00 : f32
    %69 = vector.broadcast %cst_17 : f32 to vector<8x128xf32>
    %70 = arith.addf %69, %68 : vector<8x128xf32>
    %71 = arith.divf %69, %70 : vector<8x128xf32>
    %72 = math.tanh %66 : vector<8x128xf32>
    %73 = vector.extract_strided_slice %71 {offsets = [0, 0], sizes = [8, 32], strides = [1, 1]} : vector<8x128xf32> to vector<8x32xf32>
    %74 = vector.extract_strided_slice %72 {offsets = [0, 32], sizes = [8, 32], strides = [1, 1]} : vector<8x128xf32> to vector<8x32xf32>
    %75 = vector.extract_strided_slice %71 {offsets = [0, 64], sizes = [8, 32], strides = [1, 1]} : vector<8x128xf32> to vector<8x32xf32>
    %76 = vector.extract_strided_slice %71 {offsets = [0, 96], sizes = [8, 32], strides = [1, 1]} : vector<8x128xf32> to vector<8x32xf32>
    %77 = arith.mulf %61, %75 : vector<8x32xf32>
    %78 = arith.mulf %73, %74 : vector<8x32xf32>
    %79 = arith.addf %77, %78 : vector<8x32xf32>
    %80 = math.tanh %79 : vector<8x32xf32>
    %81 = arith.mulf %76, %80 : vector<8x32xf32>
    %82 = vector.extract_strided_slice %6 {offsets = [32, 0], sizes = [8, 128], strides = [1, 1]} : vector<64x128xf32> to vector<8x128xf32>
    %cst_18 = arith.constant dense<0.000000e+00> : vector<8x128xf32>
    %83 = tpu.matmul %81, %7, %cst_18 {dimension_numbers = #tpu.dot_dimension_numbers<[1], [0], [0], [1], [0, 0, 1, 1], [], []>} : vector<8x32xf32>, vector<32x128xf32>, vector<8x128xf32> -> vector<8x128xf32>
    %84 = arith.addf %82, %83 : vector<8x128xf32>
    %85 = arith.negf %84 : vector<8x128xf32>
    %86 = math.exp %85 : vector<8x128xf32>
    %cst_19 = arith.constant 1.000000e+00 : f32
    %87 = vector.broadcast %cst_19 : f32 to vector<8x128xf32>
    %88 = arith.addf %87, %86 : vector<8x128xf32>
    %89 = arith.divf %87, %88 : vector<8x128xf32>
    %90 = math.tanh %84 : vector<8x128xf32>
    %91 = vector.extract_strided_slice %89 {offsets = [0, 0], sizes = [8, 32], strides = [1, 1]} : vector<8x128xf32> to vector<8x32xf32>
    %92 = vector.extract_strided_slice %90 {offsets = [0, 32], sizes = [8, 32], strides = [1, 1]} : vector<8x128xf32> to vector<8x32xf32>
    %93 = vector.extract_strided_slice %89 {offsets = [0, 64], sizes = [8, 32], strides = [1, 1]} : vector<8x128xf32> to vector<8x32xf32>
    %94 = vector.extract_strided_slice %89 {offsets = [0, 96], sizes = [8, 32], strides = [1, 1]} : vector<8x128xf32> to vector<8x32xf32>
    %95 = arith.mulf %79, %93 : vector<8x32xf32>
    %96 = arith.mulf %91, %92 : vector<8x32xf32>
    %97 = arith.addf %95, %96 : vector<8x32xf32>
    %98 = math.tanh %97 : vector<8x32xf32>
    %99 = arith.mulf %94, %98 : vector<8x32xf32>
    %100 = vector.extract_strided_slice %6 {offsets = [40, 0], sizes = [8, 128], strides = [1, 1]} : vector<64x128xf32> to vector<8x128xf32>
    %cst_20 = arith.constant dense<0.000000e+00> : vector<8x128xf32>
    %101 = tpu.matmul %99, %7, %cst_20 {dimension_numbers = #tpu.dot_dimension_numbers<[1], [0], [0], [1], [0, 0, 1, 1], [], []>} : vector<8x32xf32>, vector<32x128xf32>, vector<8x128xf32> -> vector<8x128xf32>
    %102 = arith.addf %100, %101 : vector<8x128xf32>
    %103 = arith.negf %102 : vector<8x128xf32>
    %104 = math.exp %103 : vector<8x128xf32>
    %cst_21 = arith.constant 1.000000e+00 : f32
    %105 = vector.broadcast %cst_21 : f32 to vector<8x128xf32>
    %106 = arith.addf %105, %104 : vector<8x128xf32>
    %107 = arith.divf %105, %106 : vector<8x128xf32>
    %108 = math.tanh %102 : vector<8x128xf32>
    %109 = vector.extract_strided_slice %107 {offsets = [0, 0], sizes = [8, 32], strides = [1, 1]} : vector<8x128xf32> to vector<8x32xf32>
    %110 = vector.extract_strided_slice %108 {offsets = [0, 32], sizes = [8, 32], strides = [1, 1]} : vector<8x128xf32> to vector<8x32xf32>
    %111 = vector.extract_strided_slice %107 {offsets = [0, 64], sizes = [8, 32], strides = [1, 1]} : vector<8x128xf32> to vector<8x32xf32>
    %112 = vector.extract_strided_slice %107 {offsets = [0, 96], sizes = [8, 32], strides = [1, 1]} : vector<8x128xf32> to vector<8x32xf32>
    %113 = arith.mulf %97, %111 : vector<8x32xf32>
    %114 = arith.mulf %109, %110 : vector<8x32xf32>
    %115 = arith.addf %113, %114 : vector<8x32xf32>
    %116 = math.tanh %115 : vector<8x32xf32>
    %117 = arith.mulf %112, %116 : vector<8x32xf32>
    %118 = vector.extract_strided_slice %6 {offsets = [48, 0], sizes = [8, 128], strides = [1, 1]} : vector<64x128xf32> to vector<8x128xf32>
    %cst_22 = arith.constant dense<0.000000e+00> : vector<8x128xf32>
    %119 = tpu.matmul %117, %7, %cst_22 {dimension_numbers = #tpu.dot_dimension_numbers<[1], [0], [0], [1], [0, 0, 1, 1], [], []>} : vector<8x32xf32>, vector<32x128xf32>, vector<8x128xf32> -> vector<8x128xf32>
    %120 = arith.addf %118, %119 : vector<8x128xf32>
    %121 = arith.negf %120 : vector<8x128xf32>
    %122 = math.exp %121 : vector<8x128xf32>
    %cst_23 = arith.constant 1.000000e+00 : f32
    %123 = vector.broadcast %cst_23 : f32 to vector<8x128xf32>
    %124 = arith.addf %123, %122 : vector<8x128xf32>
    %125 = arith.divf %123, %124 : vector<8x128xf32>
    %126 = math.tanh %120 : vector<8x128xf32>
    %127 = vector.extract_strided_slice %125 {offsets = [0, 0], sizes = [8, 32], strides = [1, 1]} : vector<8x128xf32> to vector<8x32xf32>
    %128 = vector.extract_strided_slice %126 {offsets = [0, 32], sizes = [8, 32], strides = [1, 1]} : vector<8x128xf32> to vector<8x32xf32>
    %129 = vector.extract_strided_slice %125 {offsets = [0, 64], sizes = [8, 32], strides = [1, 1]} : vector<8x128xf32> to vector<8x32xf32>
    %130 = vector.extract_strided_slice %125 {offsets = [0, 96], sizes = [8, 32], strides = [1, 1]} : vector<8x128xf32> to vector<8x32xf32>
    %131 = arith.mulf %115, %129 : vector<8x32xf32>
    %132 = arith.mulf %127, %128 : vector<8x32xf32>
    %133 = arith.addf %131, %132 : vector<8x32xf32>
    %134 = math.tanh %133 : vector<8x32xf32>
    %135 = arith.mulf %130, %134 : vector<8x32xf32>
    %136 = vector.extract_strided_slice %6 {offsets = [56, 0], sizes = [8, 128], strides = [1, 1]} : vector<64x128xf32> to vector<8x128xf32>
    %cst_24 = arith.constant dense<0.000000e+00> : vector<8x128xf32>
    %137 = tpu.matmul %135, %7, %cst_24 {dimension_numbers = #tpu.dot_dimension_numbers<[1], [0], [0], [1], [0, 0, 1, 1], [], []>} : vector<8x32xf32>, vector<32x128xf32>, vector<8x128xf32> -> vector<8x128xf32>
    %138 = arith.addf %136, %137 : vector<8x128xf32>
    %139 = arith.negf %138 : vector<8x128xf32>
    %140 = math.exp %139 : vector<8x128xf32>
    %cst_25 = arith.constant 1.000000e+00 : f32
    %141 = vector.broadcast %cst_25 : f32 to vector<8x128xf32>
    %142 = arith.addf %141, %140 : vector<8x128xf32>
    %143 = arith.divf %141, %142 : vector<8x128xf32>
    %144 = math.tanh %138 : vector<8x128xf32>
    %145 = vector.extract_strided_slice %143 {offsets = [0, 0], sizes = [8, 32], strides = [1, 1]} : vector<8x128xf32> to vector<8x32xf32>
    %146 = vector.extract_strided_slice %144 {offsets = [0, 32], sizes = [8, 32], strides = [1, 1]} : vector<8x128xf32> to vector<8x32xf32>
    %147 = vector.extract_strided_slice %143 {offsets = [0, 64], sizes = [8, 32], strides = [1, 1]} : vector<8x128xf32> to vector<8x32xf32>
    %148 = vector.extract_strided_slice %143 {offsets = [0, 96], sizes = [8, 32], strides = [1, 1]} : vector<8x128xf32> to vector<8x32xf32>
    %149 = arith.mulf %133, %147 : vector<8x32xf32>
    %150 = arith.mulf %145, %146 : vector<8x32xf32>
    %151 = arith.addf %149, %150 : vector<8x32xf32>
    %152 = math.tanh %151 : vector<8x32xf32>
    %153 = arith.mulf %148, %152 : vector<8x32xf32>
    %c0_26 = arith.constant 0 : index
    %c0_27 = arith.constant 0 : index
    %154 = vector.load %arg5[%c0_26, %c0_27] : memref<1x32xf32, #tpu.memory_space<vmem>>, vector<1x32xf32>
    "tpu.trace_start"() <{level = 10 : i32, message = "oh,bh->ob"}> : () -> ()
    %cst_28 = arith.constant dense<0.000000e+00> : vector<1x8xf32>
    %155 = tpu.matmul %154, %153, %cst_28 {dimension_numbers = #tpu.dot_dimension_numbers<[1], [1], [0], [0], [0, 0, 1, 0], [], []>} : vector<1x32xf32>, vector<8x32xf32>, vector<1x8xf32> -> vector<1x8xf32>
    "tpu.trace_stop"() : () -> ()
    %c0_29 = arith.constant 0 : index
    %156 = memref.load %arg6[%c0_29] : memref<1xf32, #tpu.memory_space<smem>>
    %157 = vector.broadcast %156 : f32 to vector<1x8xf32>
    %158 = arith.addf %155, %157 : vector<1x8xf32>
    %c0_30 = arith.constant 0 : index
    %c0_31 = arith.constant 0 : index
    %159 = vector.load %arg7[%c0_30, %c0_31] : memref<1x8xf32, #tpu.memory_space<vmem>>, vector<1x8xf32>
    tpu.vector_store %arg7[%c0_30, %c0_31], %158 {strides = array<i32>} : memref<1x8xf32, #tpu.memory_space<vmem>>, vector<1x8xf32>,
    return
  }
  func.func @transform_0(%arg0: i32) -> (i32, i32, i32) {
    %c0_i32 = arith.constant 0 : i32
    %c0_i32_0 = arith.constant 0 : i32
    %c0_i32_1 = arith.constant 0 : i32
    return %c0_i32, %arg0, %c0_i32_0 : i32, i32, i32
  }
  func.func @transform_1(%arg0: i32) -> (i32, i32) {
    %c0_i32 = arith.constant 0 : i32
    %c0_i32_0 = arith.constant 0 : i32
    %c0_i32_1 = arith.constant 0 : i32
    return %c0_i32, %c0_i32_0 : i32, i32
  }
  func.func @transform_2(%arg0: i32) -> (i32, i32) {
    %c0_i32 = arith.constant 0 : i32
    %c0_i32_0 = arith.constant 0 : i32
    %c0_i32_1 = arith.constant 0 : i32
    return %c0_i32, %c0_i32_0 : i32, i32
  }
  func.func @transform_3(%arg0: i32) -> (i32, i32) {
    %c0_i32 = arith.constant 0 : i32
    %c0_i32_0 = arith.constant 0 : i32
    %c0_i32_1 = arith.constant 0 : i32
    return %c0_i32, %c0_i32_0 : i32, i32
  }
  func.func @transform_4(%arg0: i32) -> (i32, i32) {
    %c0_i32 = arith.constant 0 : i32
    %c0_i32_0 = arith.constant 0 : i32
    %c0_i32_1 = arith.constant 0 : i32
    return %c0_i32, %c0_i32_0 : i32, i32
  }
  func.func @transform_5(%arg0: i32) -> i32 {
    %c0_i32 = arith.constant 0 : i32
    %c0_i32_0 = arith.constant 0 : i32
    return %c0_i32 : i32
  }
  func.func @transform_6(%arg0: i32) -> (i32, i32) {
    %c0_i32 = arith.constant 0 : i32
    %c0_i32_0 = arith.constant 0 : i32
    return %c0_i32, %arg0 : i32, i32
  }
}

</mosaic_0001>

<llo_original>
// kernel: tpu_custom_call.1
$region0: #{tpu_custom_call.1}
  #allocation0 [shape = 'u32[]', space=smem, size = 0x4, offset = 0x4, fixed_abs, tag = 'smem constant byte address 0x4 - core index']
  #allocation1 [shape = 'u32[144,128]{1,0:T(1,128)}', space=vmem, size = 0x12000, scoped, tag = 'internal scratch']
  #allocation2 [shape = 'f32[1]{0:T(128)S(6)}', space=smem, size = 0x200, scoped, tag = 'scoped memory for tpu_custom_call.1']
  %s0 = inlined_call_operand.hbm [shape: f32[8,8,16], index: 0, kind: input, shape index: {}]
  %s1 = inlined_call_operand.hbm [shape: f32[16,128], index: 1, kind: input, shape index: {}]
  %s2 = inlined_call_operand.hbm [shape: f32[32,128], index: 2, kind: input, shape index: {}]
  %s3 = inlined_call_operand.vmem [shape: f32[1,128], index: 3, kind: input, shape index: {}]
  %s4 = inlined_call_operand.vmem [shape: f32[1,32], index: 4, kind: input, shape index: {}]
  %s5 = inlined_call_operand.<no memory space> [shape: f32[1], index: 5, kind: input, shape index: {}]
  %s6 = inlined_call_operand.hbm [shape: f32[1,8], index: 6, kind: output, shape index: {}]
  %s7 = sld [smem:[#allocation0]]
  $region46: #{tpu_custom_call.1} parent=0
    _
  %s9 = ssub.s32 1, %s7
  %s10 = scalar_select 0, %s9, %s7
  %11 = sst [smem:[#allocation2]] %s5
  $region1: #{tpu_custom_call.1} parent=0
    #allocation3 [shape = 'u8[32768]{0}', space=vmem, size = 0x8000, scoped, tag = 'input window, operand 0, single buffered']
    #allocation4 [shape = 's32[1]{0}', space=sflag, size = 0x4, scoped, tag = 'scoped memory for tpu_custom_call.1']
    #allocation5 [shape = 's32[1]{0}', space=sflag, size = 0x4, scoped, tag = 'scoped memory for tpu_custom_call.1']
    #allocation6 [shape = 'u8[8192]{0}', space=vmem, size = 0x2000, scoped, tag = 'input window, operand 1, single buffered']
    #allocation7 [shape = 's32[1]{0}', space=sflag, size = 0x4, scoped, tag = 'scoped memory for tpu_custom_call.1']
    #allocation8 [shape = 'u8[16384]{0}', space=vmem, size = 0x4000, scoped, tag = 'input window, operand 2, single buffered']
    #allocation9 [shape = 'u8[512]{0}', space=vmem, size = 0x400, scoped, tag = 'output window, operand 0, single buffered']
    %12 = vsyncpa [#allocation4], 0
    %13 = vsyncpa [#allocation7], 0
    %14 = vsyncpa [#allocation5], 0
    // Predicated region
    $region2: #{tpu_custom_call.1} parent=1 // pred_check
      _
    $region3: #{tpu_custom_call.1} parent=1 // pred_check_branch
      %16 = sbr.rel (0) target = $region5
    $region4: #{tpu_custom_call.1} parent=1 // pred_region
      %s18 = ssub.s32 1024, 1024
      %19 = vsyncadd [#allocation4], %s18
      %s20 = sshll.u32 [#allocation3], 4
      %s21 = int_to_ptr.vmem [resolvable:$true] %s20
      %26 = dma.hbm_to_vmem [thread:$0]  %s0, 1024, %s21, [#allocation4], 128, 128, 8
    $region5: #{tpu_custom_call.1} parent=1 // pred_fallthru
      _
    // Predicated region
    $region6: #{tpu_custom_call.1} parent=1 // pred_check
      _
    $region7: #{tpu_custom_call.1} parent=1 // pred_check_branch
      %28 = sbr.rel (0) target = $region9
    $region8: #{tpu_custom_call.1} parent=1 // pred_region
      %s30 = ssub.s32 256, 256
      %31 = vsyncadd [#allocation7], %s30
      %s32 = sshll.u32 [#allocation6], 4
      %s33 = int_to_ptr.vmem [resolvable:$true] %s32
      %38 = dma.hbm_to_vmem [thread:$0]  %s1, 256, %s33, [#allocation7], 128, 128, 8
    $region9: #{tpu_custom_call.1} parent=1 // pred_fallthru
      _
    // Predicated region
    $region10: #{tpu_custom_call.1} parent=1 // pred_check
      _
    $region11: #{tpu_custom_call.1} parent=1 // pred_check_branch
      %40 = sbr.rel (0) target = $region13
    $region12: #{tpu_custom_call.1} parent=1 // pred_region
      %s42 = ssub.s32 512, 512
      %43 = vsyncadd [#allocation7], %s42
      %s44 = sshll.u32 [#allocation8], 4
      %s45 = int_to_ptr.vmem [resolvable:$true] %s44
      %50 = dma.hbm_to_vmem [thread:$0]  %s2, 512, %s45, [#allocation7], 128, 128, 8
    $region13: #{tpu_custom_call.1} parent=1 // pred_fallthru
      _
    // Predicated region
    $region14: #{tpu_custom_call.1} parent=1 // pred_check
      _
    $region15: #{tpu_custom_call.1} parent=1 // pred_check_branch
      %52 = sbr.rel (0) target = $region17
    $region16: #{tpu_custom_call.1} parent=1 // pred_region
      _
    $region17: #{tpu_custom_call.1} parent=1 // pred_fallthru
      _
    // Predicated region
    $region18: #{tpu_custom_call.1} parent=1 // pred_check
      _
    $region19: #{tpu_custom_call.1} parent=1 // pred_check_branch
      %54 = sbr.rel (0) target = $region21
    $region20: #{tpu_custom_call.1} parent=1 // pred_region
      _
    $region21: #{tpu_custom_call.1} parent=1 // pred_fallthru
      _
    // Predicated region
    $region22: #{tpu_custom_call.1} parent=1 // pred_check
      _
    $region23: #{tpu_custom_call.1} parent=1 // pred_check_branch
      %56 = sbr.rel (0) target = $region25
    $region24: #{tpu_custom_call.1} parent=1 // pred_region
      _
    $region25: #{tpu_custom_call.1} parent=1 // pred_fallthru
      _
    // Predicated region
    $region26: #{tpu_custom_call.1} parent=1 // pred_check
      _
    $region27: #{tpu_custom_call.1} parent=1 // pred_check_branch
      %58 = sbr.rel (0) target = $region29
    $region28: #{tpu_custom_call.1} parent=1 // pred_region
      %59 = dma.done [#allocation4], 1024
    $region29: #{tpu_custom_call.1} parent=1 // pred_fallthru
      _
    // Predicated region
    $region30: #{tpu_custom_call.1} parent=1 // pred_check
      _
    $region31: #{tpu_custom_call.1} parent=1 // pred_check_branch
      %61 = sbr.rel (0) target = $region33
    $region32: #{tpu_custom_call.1} parent=1 // pred_region
      %62 = dma.done [#allocation7], 256
    $region33: #{tpu_custom_call.1} parent=1 // pred_fallthru
      _
    // Predicated region
    $region34: #{tpu_custom_call.1} parent=1 // pred_check
      _
    $region35: #{tpu_custom_call.1} parent=1 // pred_check_branch
      %64 = sbr.rel (0) target = $region37
    $region36: #{tpu_custom_call.1} parent=1 // pred_region
      %65 = dma.done [#allocation7], 512
    $region37: #{tpu_custom_call.1} parent=1 // pred_fallthru
      _
    %v66 = vld [vmem:[#allocation3] sm:$0xff]
    %v67 = vld [vmem:[#allocation3 + $0x8] sm:$0xff]
    %v68 = vld [vmem:[#allocation3 + $0x10] sm:$0xff]
    %v69 = vld [vmem:[#allocation3 + $0x18] sm:$0xff]
    %v70 = vld [vmem:[#allocation3 + $0x20] sm:$0xff]
    %v71 = vld [vmem:[#allocation3 + $0x28] sm:$0xff]
    %v72 = vld [vmem:[#allocation3 + $0x30] sm:$0xff]
    %v73 = vld [vmem:[#allocation3 + $0x38] sm:$0xff]
    %v74 = vld [vmem:[#allocation6] sm:$0xff]
    %v75 = vld [vmem:[#allocation6 + $0x8] sm:$0xff]
    %v76 = vld [vmem:[%s3] sm:$0x1]
    %v78 = vlaneseq
    %v79 = vshrl.u32 %v78, 7
    %v80 = vsub.s32 0, %v79
    %v81 = vrot.slane %v76, %v80
    %vm83 = vcmask 130048
    %v85 = vsel %vm83, %v66, 0
    %v88 = vsel %vm83, %v67, 0
    %v91 = vsel %vm83, %v68, 0
    %v94 = vsel %vm83, %v69, 0
    %v97 = vsel %vm83, %v70, 0
    %v100 = vsel %vm83, %v71, 0
    %v103 = vsel %vm83, %v72, 0
    %v106 = vsel %vm83, %v73, 0
    %108 = vmatprep.subr.mxu0 0.0
    %109 = vmatpush1.msra.mxu0 %v74
    %110 = vmatprep.subr.mxu0 0.0
    %111 = vmatpush1.msra.mxu0 %v75
    %112 = vmatprep.subr.mxu0 0.0
    %113 = vmatpush1.msra.mxu0 0.0
    %114 = vmatprep.subr.mxu0 0.0
    %115 = vmatpush1.msra.mxu0 0.0
    %116 = vmatprep.subr.mxu0 0.0
    %117 = vmatpush1.msra.mxu0 0.0
    %118 = vmatprep.subr.mxu0 0.0
    %119 = vmatpush1.msra.mxu0 0.0
    %120 = vmatprep.subr.mxu0 0.0
    %121 = vmatpush1.msra.mxu0 0.0
    %122 = vmatprep.subr.mxu0 0.0
    %123 = vmatpush1.msra.mxu0 0.0
    %124 = vmatprep.subr.mxu0 0.0
    %125 = vmatpush1.msra.mxu0 0.0
    %126 = vmatprep.subr.mxu0 0.0
    %127 = vmatpush1.msra.mxu0 0.0
    %128 = vmatprep.subr.mxu0 0.0
    %129 = vmatpush1.msra.mxu0 0.0
    %130 = vmatprep.subr.mxu0 0.0
    %131 = vmatpush1.msra.mxu0 0.0
    %132 = vmatprep.subr.mxu0 0.0
    %133 = vmatpush1.msra.mxu0 0.0
    %134 = vmatprep.subr.mxu0 0.0
    %135 = vmatpush1.msra.mxu0 0.0
    %136 = vmatprep.subr.mxu0 0.0
    %137 = vmatpush1.msra.mxu0 0.0
    %138 = vmatprep.subr.mxu0 0.0
    %139 = vmatpush1.msra.mxu0 0.0
    %140 = vmatprep.subr.mxu0 0.0
    %141 = vmatpush1.msra.mxu0 0.0
    %142 = vmatprep.subr.mxu0 0.0
    %143 = vmatpush1.msra.mxu0 0.0
    %144 = vmatprep.subr.mxu0 0.0
    %145 = vmatpush1.msra.mxu0 0.0
    %146 = vmatprep.subr.mxu0 0.0
    %147 = vmatpush1.msra.mxu0 0.0
    %148 = vmatprep.subr.mxu0 0.0
    %149 = vmatpush1.msra.mxu0 0.0
    %150 = vmatprep.subr.mxu0 0.0
    %151 = vmatpush1.msra.mxu0 0.0
    %152 = vmatprep.subr.mxu0 0.0
    %153 = vmatpush1.msra.mxu0 0.0
    %154 = vmatprep.subr.mxu0 0.0
    %155 = vmatpush1.msra.mxu0 0.0
    %156 = vmatprep.subr.mxu0 0.0
    %157 = vmatpush1.msra.mxu0 0.0
    %158 = vmatprep.subr.mxu0 0.0
    %159 = vmatpush1.msra.mxu0 0.0
    %160 = vmatprep.subr.mxu0 0.0
    %161 = vmatpush1.msra.mxu0 0.0
    %162 = vmatprep.subr.mxu0 0.0
    %163 = vmatpush1.msra.mxu0 0.0
    %164 = vmatprep.subr.mxu0 0.0
    %165 = vmatpush1.msra.mxu0 0.0
    %166 = vmatprep.subr.mxu0 0.0
    %167 = vmatpush1.msra.mxu0 0.0
    %168 = vmatprep.subr.mxu0 0.0
    %169 = vmatpush1.msra.mxu0 0.0
    %170 = vmatprep.subr.mxu0 0.0
    %171 = vmatpush1.msra.mxu0 0.0
    %172 = vmatprep.mubr.f32.mxu0 0.0
    %173 = vmatmul.mubr.f32.gmra.mrb[0].mxu0 %v85
    %v174 = vpop.f32.mrb[0].mxu0
    %v175 = vadd.f32 %v81, %v174
    %v176 = vpop.f32.mrb[0].mxu0
    %177 = vmatprep.mubr.f32.mxu0 0.0
    %178 = vmatmul.mubr.f32.gmra.mrb[0].mxu0 %v88
    %v179 = vpop.f32.mrb[0].mxu0
    %v180 = vadd.f32 %v81, %v179
    %v181 = vpop.f32.mrb[0].mxu0
    %182 = vmatprep.mubr.f32.mxu0 0.0
    %183 = vmatmul.mubr.f32.gmra.mrb[0].mxu0 %v91
    %v184 = vpop.f32.mrb[0].mxu0
    %v185 = vadd.f32 %v81, %v184
    %v186 = vpop.f32.mrb[0].mxu0
    %187 = vmatprep.mubr.f32.mxu0 0.0
    %188 = vmatmul.mubr.f32.gmra.mrb[0].mxu0 %v94
    %v189 = vpop.f32.mrb[0].mxu0
    %v190 = vadd.f32 %v81, %v189
    %v191 = vpop.f32.mrb[0].mxu0
    %192 = vmatprep.mubr.f32.mxu0 0.0
    %193 = vmatmul.mubr.f32.gmra.mrb[0].mxu0 %v97
    %v194 = vpop.f32.mrb[0].mxu0
    %v195 = vadd.f32 %v81, %v194
    %v196 = vpop.f32.mrb[0].mxu0
    %197 = vmatprep.mubr.f32.mxu0 0.0
    %198 = vmatmul.mubr.f32.gmra.mrb[0].mxu0 %v100
    %v199 = vpop.f32.mrb[0].mxu0
    %v200 = vadd.f32 %v81, %v199
    %v201 = vpop.f32.mrb[0].mxu0
    %202 = vmatprep.mubr.f32.mxu0 0.0
    %203 = vmatmul.mubr.f32.gmra.mrb[0].mxu0 %v103
    %v204 = vpop.f32.mrb[0].mxu0
    %v205 = vadd.f32 %v81, %v204
    %v206 = vpop.f32.mrb[0].mxu0
    %207 = vmatprep.mubr.f32.mxu0 0.0
    %208 = vmatmul.mubr.f32.gmra.mrb[0].mxu0 %v106
    %v209 = vpop.f32.mrb[0].mxu0
    %v210 = vadd.f32 %v81, %v209
    %v211 = vpop.f32.mrb[0].mxu0
    %212 = vdwg.mxu0
    %v213 = vld [vmem:[#allocation8] sm:$0xff]
    %v214 = vld [vmem:[#allocation8 + $0x8] sm:$0xff]
    %v215 = vld [vmem:[#allocation8 + $0x10] sm:$0xff]
    %v216 = vld [vmem:[#allocation8 + $0x18] sm:$0xff]
    %vm217 = vcmask 261120
    %v219 = vsel %vm217, 0.0, 0
    %221 = vmatprep.subr.mxu0 0.0
    %222 = vmatpush1.msra.mxu0 %v213
    %223 = vmatprep.subr.mxu0 0.0
    %224 = vmatpush1.msra.mxu0 %v214
    %225 = vmatprep.subr.mxu0 0.0
    %226 = vmatpush1.msra.mxu0 %v215
    %227 = vmatprep.subr.mxu0 0.0
    %228 = vmatpush1.msra.mxu0 %v216
    %229 = vmatprep.subr.mxu0 0.0
    %230 = vmatpush1.msra.mxu0 0.0
    %231 = vmatprep.subr.mxu0 0.0
    %232 = vmatpush1.msra.mxu0 0.0
    %233 = vmatprep.subr.mxu0 0.0
    %234 = vmatpush1.msra.mxu0 0.0
    %235 = vmatprep.subr.mxu0 0.0
    %236 = vmatpush1.msra.mxu0 0.0
    %237 = vmatprep.subr.mxu0 0.0
    %238 = vmatpush1.msra.mxu0 0.0
    %239 = vmatprep.subr.mxu0 0.0
    %240 = vmatpush1.msra.mxu0 0.0
    %241 = vmatprep.subr.mxu0 0.0
    %242 = vmatpush1.msra.mxu0 0.0
    %243 = vmatprep.subr.mxu0 0.0
    %244 = vmatpush1.msra.mxu0 0.0
    %245 = vmatprep.subr.mxu0 0.0
    %246 = vmatpush1.msra.mxu0 0.0
    %247 = vmatprep.subr.mxu0 0.0
    %248 = vmatpush1.msra.mxu0 0.0
    %249 = vmatprep.subr.mxu0 0.0
    %250 = vmatpush1.msra.mxu0 0.0
    %251 = vmatprep.subr.mxu0 0.0
    %252 = vmatpush1.msra.mxu0 0.0
    %253 = vmatprep.subr.mxu0 0.0
    %254 = vmatpush1.msra.mxu0 0.0
    %255 = vmatprep.subr.mxu0 0.0
    %256 = vmatpush1.msra.mxu0 0.0
    %257 = vmatprep.subr.mxu0 0.0
    %258 = vmatpush1.msra.mxu0 0.0
    %259 = vmatprep.subr.mxu0 0.0
    %260 = vmatpush1.msra.mxu0 0.0
    %261 = vmatprep.subr.mxu0 0.0
    %262 = vmatpush1.msra.mxu0 0.0
    %263 = vmatprep.subr.mxu0 0.0
    %264 = vmatpush1.msra.mxu0 0.0
    %265 = vmatprep.subr.mxu0 0.0
    %266 = vmatpush1.msra.mxu0 0.0
    %267 = vmatprep.subr.mxu0 0.0
    %268 = vmatpush1.msra.mxu0 0.0
    %269 = vmatprep.subr.mxu0 0.0
    %270 = vmatpush1.msra.mxu0 0.0
    %271 = vmatprep.subr.mxu0 0.0
    %272 = vmatpush1.msra.mxu0 0.0
    %273 = vmatprep.subr.mxu0 0.0
    %274 = vmatpush1.msra.mxu0 0.0
    %275 = vmatprep.subr.mxu0 0.0
    %276 = vmatpush1.msra.mxu0 0.0
    %277 = vmatprep.subr.mxu0 0.0
    %278 = vmatpush1.msra.mxu0 0.0
    %279 = vmatprep.subr.mxu0 0.0
    %280 = vmatpush1.msra.mxu0 0.0
    %281 = vmatprep.subr.mxu0 0.0
    %282 = vmatpush1.msra.mxu0 0.0
    %283 = vmatprep.subr.mxu0 0.0
    %284 = vmatpush1.msra.mxu0 0.0
    %285 = vmatprep.mubr.f32.mxu0 0.0
    %286 = vmatmul.mubr.f32.gmra.mrb[0].mxu0 %v219
    %v287 = vpop.f32.mrb[0].mxu0
    %v288 = vadd.f32 0.0, %v287
    %v289 = vpop.f32.mrb[0].mxu0
    %290 = vdwg.mxu0
    %v291 = vadd.f32 %v175, %v288
    %v292 = vxor.u32 %v291, 2147483648
    %v293 = vmul.f32 %v292, 1.442695
    %v294 = vpow.pop %v293
    %v295 = vadd.f32 %v294, 1.0
    %v296 = vrcp.pop %v295
    %v297 = vmul.f32 1.0, %v296
    %v298 = vtanh.pop %v291
    %v299 = vmul.f32 %v297, 0.0
    %301 = vrot.lane.b32.xlu0 %v298, 96
    %v302 = vpop.permute.xlu0 %301
    %v304 = vmul.f32 %v297, %v302
    %306 = vrot.lane.b32.xlu0 %v304, 64
    %v307 = vpop.permute.xlu0 %306
    %v309 = vadd.f32 %v299, %v307
    %v310 = vtanh.pop %v309
    %312 = vrot.lane.b32.xlu0 %v310, 32
    %v313 = vpop.permute.xlu0 %312
    %v315 = vmul.f32 %v297, %v313
    %317 = vrot.lane.b32.xlu0 %v315, 32
    %v318 = vpop.permute.xlu0 %317
    %v319 = vsel %vm217, %v318, 0
    %321 = vmatprep.subr.mxu0 0.0
    %322 = vmatpush1.msra.mxu0 %v213
    %323 = vmatprep.subr.mxu0 0.0
    %324 = vmatpush1.msra.mxu0 %v214
    %325 = vmatprep.subr.mxu0 0.0
    %326 = vmatpush1.msra.mxu0 %v215
    %327 = vmatprep.subr.mxu0 0.0
    %328 = vmatpush1.msra.mxu0 %v216
    %329 = vmatprep.subr.mxu0 0.0
    %330 = vmatpush1.msra.mxu0 0.0
    %331 = vmatprep.subr.mxu0 0.0
    %332 = vmatpush1.msra.mxu0 0.0
    %333 = vmatprep.subr.mxu0 0.0
    %334 = vmatpush1.msra.mxu0 0.0
    %335 = vmatprep.subr.mxu0 0.0
    %336 = vmatpush1.msra.mxu0 0.0
    %337 = vmatprep.subr.mxu0 0.0
    %338 = vmatpush1.msra.mxu0 0.0
    %339 = vmatprep.subr.mxu0 0.0
    %340 = vmatpush1.msra.mxu0 0.0
    %341 = vmatprep.subr.mxu0 0.0
    %342 = vmatpush1.msra.mxu0 0.0
    %343 = vmatprep.subr.mxu0 0.0
    %344 = vmatpush1.msra.mxu0 0.0
    %345 = vmatprep.subr.mxu0 0.0
    %346 = vmatpush1.msra.mxu0 0.0
    %347 = vmatprep.subr.mxu0 0.0
    %348 = vmatpush1.msra.mxu0 0.0
    %349 = vmatprep.subr.mxu0 0.0
    %350 = vmatpush1.msra.mxu0 0.0
    %351 = vmatprep.subr.mxu0 0.0
    %352 = vmatpush1.msra.mxu0 0.0
    %353 = vmatprep.subr.mxu0 0.0
    %354 = vmatpush1.msra.mxu0 0.0
    %355 = vmatprep.subr.mxu0 0.0
    %356 = vmatpush1.msra.mxu0 0.0
    %357 = vmatprep.subr.mxu0 0.0
    %358 = vmatpush1.msra.mxu0 0.0
    %359 = vmatprep.subr.mxu0 0.0
    %360 = vmatpush1.msra.mxu0 0.0
    %361 = vmatprep.subr.mxu0 0.0
    %362 = vmatpush1.msra.mxu0 0.0
    %363 = vmatprep.subr.mxu0 0.0
    %364 = vmatpush1.msra.mxu0 0.0
    %365 = vmatprep.subr.mxu0 0.0
    %366 = vmatpush1.msra.mxu0 0.0
    %367 = vmatprep.subr.mxu0 0.0
    %368 = vmatpush1.msra.mxu0 0.0
    %369 = vmatprep.subr.mxu0 0.0
    %370 = vmatpush1.msra.mxu0 0.0
    %371 = vmatprep.subr.mxu0 0.0
    %372 = vmatpush1.msra.mxu0 0.0
    %373 = vmatprep.subr.mxu0 0.0
    %374 = vmatpush1.msra.mxu0 0.0
    %375 = vmatprep.subr.mxu0 0.0
    %376 = vmatpush1.msra.mxu0 0.0
    %377 = vmatprep.subr.mxu0 0.0
    %378 = vmatpush1.msra.mxu0 0.0
    %379 = vmatprep.subr.mxu0 0.0
    %380 = vmatpush1.msra.mxu0 0.0
    %381 = vmatprep.subr.mxu0 0.0
    %382 = vmatpush1.msra.mxu0 0.0
    %383 = vmatprep.subr.mxu0 0.0
    %384 = vmatpush1.msra.mxu0 0.0
    %385 = vmatprep.mubr.f32.mxu0 0.0
    %386 = vmatmul.mubr.f32.gmra.mrb[0].mxu0 %v319
    %v387 = vpop.f32.mrb[0].mxu0
    %v388 = vadd.f32 0.0, %v387
    %v389 = vpop.f32.mrb[0].mxu0
    %390 = vdwg.mxu0
    %v391 = vadd.f32 %v180, %v388
    %v392 = vxor.u32 %v391, 2147483648
    %v393 = vmul.f32 %v392, 1.442695
    %v394 = vpow.pop %v393
    %v395 = vadd.f32 %v394, 1.0
    %v396 = vrcp.pop %v395
    %v397 = vmul.f32 1.0, %v396
    %v398 = vtanh.pop %v391
    %v399 = vmul.f32 %v309, %v397
    %401 = vrot.lane.b32.xlu0 %v398, 96
    %v402 = vpop.permute.xlu0 %401
    %v404 = vmul.f32 %v397, %v402
    %406 = vrot.lane.b32.xlu0 %v404, 64
    %v407 = vpop.permute.xlu0 %406
    %v409 = vadd.f32 %v399, %v407
    %v410 = vtanh.pop %v409
    %412 = vrot.lane.b32.xlu0 %v410, 32
    %v413 = vpop.permute.xlu0 %412
    %v415 = vmul.f32 %v397, %v413
    %417 = vrot.lane.b32.xlu0 %v415, 32
    %v418 = vpop.permute.xlu0 %417
    %v419 = vsel %vm217, %v418, 0
    %421 = vmatprep.subr.mxu0 0.0
    %422 = vmatpush1.msra.mxu0 %v213
    %423 = vmatprep.subr.mxu0 0.0
    %424 = vmatpush1.msra.mxu0 %v214
    %425 = vmatprep.subr.mxu0 0.0
    %426 = vmatpush1.msra.mxu0 %v215
    %427 = vmatprep.subr.mxu0 0.0
    %428 = vmatpush1.msra.mxu0 %v216
    %429 = vmatprep.subr.mxu0 0.0
    %430 = vmatpush1.msra.mxu0 0.0
    %431 = vmatprep.subr.mxu0 0.0
    %432 = vmatpush1.msra.mxu0 0.0
    %433 = vmatprep.subr.mxu0 0.0
    %434 = vmatpush1.msra.mxu0 0.0
    %435 = vmatprep.subr.mxu0 0.0
    %436 = vmatpush1.msra.mxu0 0.0
    %437 = vmatprep.subr.mxu0 0.0
    %438 = vmatpush1.msra.mxu0 0.0
    %439 = vmatprep.subr.mxu0 0.0
    %440 = vmatpush1.msra.mxu0 0.0
    %441 = vmatprep.subr.mxu0 0.0
    %442 = vmatpush1.msra.mxu0 0.0
    %443 = vmatprep.subr.mxu0 0.0
    %444 = vmatpush1.msra.mxu0 0.0
    %445 = vmatprep.subr.mxu0 0.0
    %446 = vmatpush1.msra.mxu0 0.0
    %447 = vmatprep.subr.mxu0 0.0
    %448 = vmatpush1.msra.mxu0 0.0
    %449 = vmatprep.subr.mxu0 0.0
    %450 = vmatpush1.msra.mxu0 0.0
    %451 = vmatprep.subr.mxu0 0.0
    %452 = vmatpush1.msra.mxu0 0.0
    %453 = vmatprep.subr.mxu0 0.0
    %454 = vmatpush1.msra.mxu0 0.0
    %455 = vmatprep.subr.mxu0 0.0
    %456 = vmatpush1.msra.mxu0 0.0
    %457 = vmatprep.subr.mxu0 0.0
    %458 = vmatpush1.msra.mxu0 0.0
    %459 = vmatprep.subr.mxu0 0.0
    %460 = vmatpush1.msra.mxu0 0.0
    %461 = vmatprep.subr.mxu0 0.0
    %462 = vmatpush1.msra.mxu0 0.0
    %463 = vmatprep.subr.mxu0 0.0
    %464 = vmatpush1.msra.mxu0 0.0
    %465 = vmatprep.subr.mxu0 0.0
    %466 = vmatpush1.msra.mxu0 0.0
    %467 = vmatprep.subr.mxu0 0.0
    %468 = vmatpush1.msra.mxu0 0.0
    %469 = vmatprep.subr.mxu0 0.0
    %470 = vmatpush1.msra.mxu0 0.0
    %471 = vmatprep.subr.mxu0 0.0
    %472 = vmatpush1.msra.mxu0 0.0
    %473 = vmatprep.subr.mxu0 0.0
    %474 = vmatpush1.msra.mxu0 0.0
    %475 = vmatprep.subr.mxu0 0.0
    %476 = vmatpush1.msra.mxu0 0.0
    %477 = vmatprep.subr.mxu0 0.0
    %478 = vmatpush1.msra.mxu0 0.0
    %479 = vmatprep.subr.mxu0 0.0
    %480 = vmatpush1.msra.mxu0 0.0
    %481 = vmatprep.subr.mxu0 0.0
    %482 = vmatpush1.msra.mxu0 0.0
    %483 = vmatprep.subr.mxu0 0.0
    %484 = vmatpush1.msra.mxu0 0.0
    %485 = vmatprep.mubr.f32.mxu0 0.0
    %486 = vmatmul.mubr.f32.gmra.mrb[0].mxu0 %v419
    %v487 = vpop.f32.mrb[0].mxu0
    %v488 = vadd.f32 0.0, %v487
    %v489 = vpop.f32.mrb[0].mxu0
    %490 = vdwg.mxu0
    %v491 = vadd.f32 %v185, %v488
    %v492 = vxor.u32 %v491, 2147483648
    %v493 = vmul.f32 %v492, 1.442695
    %v494 = vpow.pop %v493
    %v495 = vadd.f32 %v494, 1.0
    %v496 = vrcp.pop %v495
    %v497 = vmul.f32 1.0, %v496
    %v498 = vtanh.pop %v491
    %v499 = vmul.f32 %v409, %v497
    %501 = vrot.lane.b32.xlu0 %v498, 96
    %v502 = vpop.permute.xlu0 %501
    %v504 = vmul.f32 %v497, %v502
    %506 = vrot.lane.b32.xlu0 %v504, 64
    %v507 = vpop.permute.xlu0 %506
    %v509 = vadd.f32 %v499, %v507
    %v510 = vtanh.pop %v509
    %512 = vrot.lane.b32.xlu0 %v510, 32
    %v513 = vpop.permute.xlu0 %512
    %v515 = vmul.f32 %v497, %v513
    %517 = vrot.lane.b32.xlu0 %v515, 32
    %v518 = vpop.permute.xlu0 %517
    %v519 = vsel %vm217, %v518, 0
    %521 = vmatprep.subr.mxu0 0.0
    %522 = vmatpush1.msra.mxu0 %v213
    %523 = vmatprep.subr.mxu0 0.0
    %524 = vmatpush1.msra.mxu0 %v214
    %525 = vmatprep.subr.mxu0 0.0
    %526 = vmatpush1.msra.mxu0 %v215
    %527 = vmatprep.subr.mxu0 0.0
    %528 = vmatpush1.msra.mxu0 %v216
    %529 = vmatprep.subr.mxu0 0.0
    %530 = vmatpush1.msra.mxu0 0.0
    %531 = vmatprep.subr.mxu0 0.0
    %532 = vmatpush1.msra.mxu0 0.0
    %533 = vmatprep.subr.mxu0 0.0
    %534 = vmatpush1.msra.mxu0 0.0
    %535 = vmatprep.subr.mxu0 0.0
    %536 = vmatpush1.msra.mxu0 0.0
    %537 = vmatprep.subr.mxu0 0.0
    %538 = vmatpush1.msra.mxu0 0.0
    %539 = vmatprep.subr.mxu0 0.0
    %540 = vmatpush1.msra.mxu0 0.0
    %541 = vmatprep.subr.mxu0 0.0
    %542 = vmatpush1.msra.mxu0 0.0
    %543 = vmatprep.subr.mxu0 0.0
    %544 = vmatpush1.msra.mxu0 0.0
    %545 = vmatprep.subr.mxu0 0.0
    %546 = vmatpush1.msra.mxu0 0.0
    %547 = vmatprep.subr.mxu0 0.0
    %548 = vmatpush1.msra.mxu0 0.0
    %549 = vmatprep.subr.mxu0 0.0
    %550 = vmatpush1.msra.mxu0 0.0
    %551 = vmatprep.subr.mxu0 0.0
    %552 = vmatpush1.msra.mxu0 0.0
    %553 = vmatprep.subr.mxu0 0.0
    %554 = vmatpush1.msra.mxu0 0.0
    %555 = vmatprep.subr.mxu0 0.0
    %556 = vmatpush1.msra.mxu0 0.0
    %557 = vmatprep.subr.mxu0 0.0
    %558 = vmatpush1.msra.mxu0 0.0
    %559 = vmatprep.subr.mxu0 0.0
    %560 = vmatpush1.msra.mxu0 0.0
    %561 = vmatprep.subr.mxu0 0.0
    %562 = vmatpush1.msra.mxu0 0.0
    %563 = vmatprep.subr.mxu0 0.0
    %564 = vmatpush1.msra.mxu0 0.0
    %565 = vmatprep.subr.mxu0 0.0
    %566 = vmatpush1.msra.mxu0 0.0
    %567 = vmatprep.subr.mxu0 0.0
    %568 = vmatpush1.msra.mxu0 0.0
    %569 = vmatprep.subr.mxu0 0.0
    %570 = vmatpush1.msra.mxu0 0.0
    %571 = vmatprep.subr.mxu0 0.0
    %572 = vmatpush1.msra.mxu0 0.0
    %573 = vmatprep.subr.mxu0 0.0
    %574 = vmatpush1.msra.mxu0 0.0
    %575 = vmatprep.subr.mxu0 0.0
    %576 = vmatpush1.msra.mxu0 0.0
    %577 = vmatprep.subr.mxu0 0.0
    %578 = vmatpush1.msra.mxu0 0.0
    %579 = vmatprep.subr.mxu0 0.0
    %580 = vmatpush1.msra.mxu0 0.0
    %581 = vmatprep.subr.mxu0 0.0
    %582 = vmatpush1.msra.mxu0 0.0
    %583 = vmatprep.subr.mxu0 0.0
    %584 = vmatpush1.msra.mxu0 0.0
    %585 = vmatprep.mubr.f32.mxu0 0.0
    %586 = vmatmul.mubr.f32.gmra.mrb[0].mxu0 %v519
    %v587 = vpop.f32.mrb[0].mxu0
    %v588 = vadd.f32 0.0, %v587
    %v589 = vpop.f32.mrb[0].mxu0
    %590 = vdwg.mxu0
    %v591 = vadd.f32 %v190, %v588
    %v592 = vxor.u32 %v591, 2147483648
    %v593 = vmul.f32 %v592, 1.442695
    %v594 = vpow.pop %v593
    %v595 = vadd.f32 %v594, 1.0
    %v596 = vrcp.pop %v595
    %v597 = vmul.f32 1.0, %v596
    %v598 = vtanh.pop %v591
    %v599 = vmul.f32 %v509, %v597
    %601 = vrot.lane.b32.xlu0 %v598, 96
    %v602 = vpop.permute.xlu0 %601
    %v604 = vmul.f32 %v597, %v602
    %606 = vrot.lane.b32.xlu0 %v604, 64
    %v607 = vpop.permute.xlu0 %606
    %v609 = vadd.f32 %v599, %v607
    %v610 = vtanh.pop %v609
    %612 = vrot.lane.b32.xlu0 %v610, 32
    %v613 = vpop.permute.xlu0 %612
    %v615 = vmul.f32 %v597, %v613
    %617 = vrot.lane.b32.xlu0 %v615, 32
    %v618 = vpop.permute.xlu0 %617
    %v619 = vsel %vm217, %v618, 0
    %621 = vmatprep.subr.mxu0 0.0
    %622 = vmatpush1.msra.mxu0 %v213
    %623 = vmatprep.subr.mxu0 0.0
    %624 = vmatpush1.msra.mxu0 %v214
    %625 = vmatprep.subr.mxu0 0.0
    %626 = vmatpush1.msra.mxu0 %v215
    %627 = vmatprep.subr.mxu0 0.0
    %628 = vmatpush1.msra.mxu0 %v216
    %629 = vmatprep.subr.mxu0 0.0
    %630 = vmatpush1.msra.mxu0 0.0
    %631 = vmatprep.subr.mxu0 0.0
    %632 = vmatpush1.msra.mxu0 0.0
    %633 = vmatprep.subr.mxu0 0.0
    %634 = vmatpush1.msra.mxu0 0.0
    %635 = vmatprep.subr.mxu0 0.0
    %636 = vmatpush1.msra.mxu0 0.0
    %637 = vmatprep.subr.mxu0 0.0
    %638 = vmatpush1.msra.mxu0 0.0
    %639 = vmatprep.subr.mxu0 0.0
    %640 = vmatpush1.msra.mxu0 0.0
    %641 = vmatprep.subr.mxu0 0.0
    %642 = vmatpush1.msra.mxu0 0.0
    %643 = vmatprep.subr.mxu0 0.0
    %644 = vmatpush1.msra.mxu0 0.0
    %645 = vmatprep.subr.mxu0 0.0
    %646 = vmatpush1.msra.mxu0 0.0
    %647 = vmatprep.subr.mxu0 0.0
    %648 = vmatpush1.msra.mxu0 0.0
    %649 = vmatprep.subr.mxu0 0.0
    %650 = vmatpush1.msra.mxu0 0.0
    %651 = vmatprep.subr.mxu0 0.0
    %652 = vmatpush1.msra.mxu0 0.0
    %653 = vmatprep.subr.mxu0 0.0
    %654 = vmatpush1.msra.mxu0 0.0
    %655 = vmatprep.subr.mxu0 0.0
    %656 = vmatpush1.msra.mxu0 0.0
    %657 = vmatprep.subr.mxu0 0.0
    %658 = vmatpush1.msra.mxu0 0.0
    %659 = vmatprep.subr.mxu0 0.0
    %660 = vmatpush1.msra.mxu0 0.0
    %661 = vmatprep.subr.mxu0 0.0
    %662 = vmatpush1.msra.mxu0 0.0
    %663 = vmatprep.subr.mxu0 0.0
    %664 = vmatpush1.msra.mxu0 0.0
    %665 = vmatprep.subr.mxu0 0.0
    %666 = vmatpush1.msra.mxu0 0.0
    %667 = vmatprep.subr.mxu0 0.0
    %668 = vmatpush1.msra.mxu0 0.0
    %669 = vmatprep.subr.mxu0 0.0
    %670 = vmatpush1.msra.mxu0 0.0
    %671 = vmatprep.subr.mxu0 0.0
    %672 = vmatpush1.msra.mxu0 0.0
    %673 = vmatprep.subr.mxu0 0.0
    %674 = vmatpush1.msra.mxu0 0.0
    %675 = vmatprep.subr.mxu0 0.0
    %676 = vmatpush1.msra.mxu0 0.0
    %677 = vmatprep.subr.mxu0 0.0
    %678 = vmatpush1.msra.mxu0 0.0
    %679 = vmatprep.subr.mxu0 0.0
    %680 = vmatpush1.msra.mxu0 0.0
    %681 = vmatprep.subr.mxu0 0.0
    %682 = vmatpush1.msra.mxu0 0.0
    %683 = vmatprep.subr.mxu0 0.0
    %684 = vmatpush1.msra.mxu0 0.0
    %685 = vmatprep.mubr.f32.mxu0 0.0
    %686 = vmatmul.mubr.f32.gmra.mrb[0].mxu0 %v619
    %v687 = vpop.f32.mrb[0].mxu0
    %v688 = vadd.f32 0.0, %v687
    %v689 = vpop.f32.mrb[0].mxu0
    %690 = vdwg.mxu0
    %v691 = vadd.f32 %v195, %v688
    %v692 = vxor.u32 %v691, 2147483648
    %v693 = vmul.f32 %v692, 1.442695
    %v694 = vpow.pop %v693
    %v695 = vadd.f32 %v694, 1.0
    %v696 = vrcp.pop %v695
    %v697 = vmul.f32 1.0, %v696
    %v698 = vtanh.pop %v691
    %v699 = vmul.f32 %v609, %v697
    %701 = vrot.lane.b32.xlu0 %v698, 96
    %v702 = vpop.permute.xlu0 %701
    %v704 = vmul.f32 %v697, %v702
    %706 = vrot.lane.b32.xlu0 %v704, 64
    %v707 = vpop.permute.xlu0 %706
    %v709 = vadd.f32 %v699, %v707
    %v710 = vtanh.pop %v709
    %712 = vrot.lane.b32.xlu0 %v710, 32
    %v713 = vpop.permute.xlu0 %712
    %v715 = vmul.f32 %v697, %v713
    %717 = vrot.lane.b32.xlu0 %v715, 32
    %v718 = vpop.permute.xlu0 %717
    %v719 = vsel %vm217, %v718, 0
    %721 = vmatprep.subr.mxu0 0.0
    %722 = vmatpush1.msra.mxu0 %v213
    %723 = vmatprep.subr.mxu0 0.0
    %724 = vmatpush1.msra.mxu0 %v214
    %725 = vmatprep.subr.mxu0 0.0
    %726 = vmatpush1.msra.mxu0 %v215
    %727 = vmatprep.subr.mxu0 0.0
    %728 = vmatpush1.msra.mxu0 %v216
    %729 = vmatprep.subr.mxu0 0.0
    %730 = vmatpush1.msra.mxu0 0.0
    %731 = vmatprep.subr.mxu0 0.0
    %732 = vmatpush1.msra.mxu0 0.0
    %733 = vmatprep.subr.mxu0 0.0
    %734 = vmatpush1.msra.mxu0 0.0
    %735 = vmatprep.subr.mxu0 0.0
    %736 = vmatpush1.msra.mxu0 0.0
    %737 = vmatprep.subr.mxu0 0.0
    %738 = vmatpush1.msra.mxu0 0.0
    %739 = vmatprep.subr.mxu0 0.0
    %740 = vmatpush1.msra.mxu0 0.0
    %741 = vmatprep.subr.mxu0 0.0
    %742 = vmatpush1.msra.mxu0 0.0
    %743 = vmatprep.subr.mxu0 0.0
    %744 = vmatpush1.msra.mxu0 0.0
    %745 = vmatprep.subr.mxu0 0.0
    %746 = vmatpush1.msra.mxu0 0.0
    %747 = vmatprep.subr.mxu0 0.0
    %748 = vmatpush1.msra.mxu0 0.0
    %749 = vmatprep.subr.mxu0 0.0
    %750 = vmatpush1.msra.mxu0 0.0
    %751 = vmatprep.subr.mxu0 0.0
    %752 = vmatpush1.msra.mxu0 0.0
    %753 = vmatprep.subr.mxu0 0.0
    %754 = vmatpush1.msra.mxu0 0.0
    %755 = vmatprep.subr.mxu0 0.0
    %756 = vmatpush1.msra.mxu0 0.0
    %757 = vmatprep.subr.mxu0 0.0
    %758 = vmatpush1.msra.mxu0 0.0
    %759 = vmatprep.subr.mxu0 0.0
    %760 = vmatpush1.msra.mxu0 0.0
    %761 = vmatprep.subr.mxu0 0.0
    %762 = vmatpush1.msra.mxu0 0.0
    %763 = vmatprep.subr.mxu0 0.0
    %764 = vmatpush1.msra.mxu0 0.0
    %765 = vmatprep.subr.mxu0 0.0
    %766 = vmatpush1.msra.mxu0 0.0
    %767 = vmatprep.subr.mxu0 0.0
    %768 = vmatpush1.msra.mxu0 0.0
    %769 = vmatprep.subr.mxu0 0.0
    %770 = vmatpush1.msra.mxu0 0.0
    %771 = vmatprep.subr.mxu0 0.0
    %772 = vmatpush1.msra.mxu0 0.0
    %773 = vmatprep.subr.mxu0 0.0
    %774 = vmatpush1.msra.mxu0 0.0
    %775 = vmatprep.subr.mxu0 0.0
    %776 = vmatpush1.msra.mxu0 0.0
    %777 = vmatprep.subr.mxu0 0.0
    %778 = vmatpush1.msra.mxu0 0.0
    %779 = vmatprep.subr.mxu0 0.0
    %780 = vmatpush1.msra.mxu0 0.0
    %781 = vmatprep.subr.mxu0 0.0
    %782 = vmatpush1.msra.mxu0 0.0
    %783 = vmatprep.subr.mxu0 0.0
    %784 = vmatpush1.msra.mxu0 0.0
    %785 = vmatprep.mubr.f32.mxu0 0.0
    %786 = vmatmul.mubr.f32.gmra.mrb[0].mxu0 %v719
    %v787 = vpop.f32.mrb[0].mxu0
    %v788 = vadd.f32 0.0, %v787
    %v789 = vpop.f32.mrb[0].mxu0
    %790 = vdwg.mxu0
    %v791 = vadd.f32 %v200, %v788
    %v792 = vxor.u32 %v791, 2147483648
    %v793 = vmul.f32 %v792, 1.442695
    %v794 = vpow.pop %v793
    %v795 = vadd.f32 %v794, 1.0
    %v796 = vrcp.pop %v795
    %v797 = vmul.f32 1.0, %v796
    %v798 = vtanh.pop %v791
    %v799 = vmul.f32 %v709, %v797
    %801 = vrot.lane.b32.xlu0 %v798, 96
    %v802 = vpop.permute.xlu0 %801
    %v804 = vmul.f32 %v797, %v802
    %806 = vrot.lane.b32.xlu0 %v804, 64
    %v807 = vpop.permute.xlu0 %806
    %v809 = vadd.f32 %v799, %v807
    %v810 = vtanh.pop %v809
    %812 = vrot.lane.b32.xlu0 %v810, 32
    %v813 = vpop.permute.xlu0 %812
    %v815 = vmul.f32 %v797, %v813
    %817 = vrot.lane.b32.xlu0 %v815, 32
    %v818 = vpop.permute.xlu0 %817
    %v819 = vsel %vm217, %v818, 0
    %821 = vmatprep.subr.mxu0 0.0
    %822 = vmatpush1.msra.mxu0 %v213
    %823 = vmatprep.subr.mxu0 0.0
    %824 = vmatpush1.msra.mxu0 %v214
    %825 = vmatprep.subr.mxu0 0.0
    %826 = vmatpush1.msra.mxu0 %v215
    %827 = vmatprep.subr.mxu0 0.0
    %828 = vmatpush1.msra.mxu0 %v216
    %829 = vmatprep.subr.mxu0 0.0
    %830 = vmatpush1.msra.mxu0 0.0
    %831 = vmatprep.subr.mxu0 0.0
    %832 = vmatpush1.msra.mxu0 0.0
    %833 = vmatprep.subr.mxu0 0.0
    %834 = vmatpush1.msra.mxu0 0.0
    %835 = vmatprep.subr.mxu0 0.0
    %836 = vmatpush1.msra.mxu0 0.0
    %837 = vmatprep.subr.mxu0 0.0
    %838 = vmatpush1.msra.mxu0 0.0
    %839 = vmatprep.subr.mxu0 0.0
    %840 = vmatpush1.msra.mxu0 0.0
    %841 = vmatprep.subr.mxu0 0.0
    %842 = vmatpush1.msra.mxu0 0.0
    %843 = vmatprep.subr.mxu0 0.0
    %844 = vmatpush1.msra.mxu0 0.0
    %845 = vmatprep.subr.mxu0 0.0
    %846 = vmatpush1.msra.mxu0 0.0
    %847 = vmatprep.subr.mxu0 0.0
    %848 = vmatpush1.msra.mxu0 0.0
    %849 = vmatprep.subr.mxu0 0.0
    %850 = vmatpush1.msra.mxu0 0.0
    %851 = vmatprep.subr.mxu0 0.0
    %852 = vmatpush1.msra.mxu0 0.0
    %853 = vmatprep.subr.mxu0 0.0
    %854 = vmatpush1.msra.mxu0 0.0
    %855 = vmatprep.subr.mxu0 0.0
    %856 = vmatpush1.msra.mxu0 0.0
    %857 = vmatprep.subr.mxu0 0.0
    %858 = vmatpush1.msra.mxu0 0.0
    %859 = vmatprep.subr.mxu0 0.0
    %860 = vmatpush1.msra.mxu0 0.0
    %861 = vmatprep.subr.mxu0 0.0
    %862 = vmatpush1.msra.mxu0 0.0
    %863 = vmatprep.subr.mxu0 0.0
    %864 = vmatpush1.msra.mxu0 0.0
    %865 = vmatprep.subr.mxu0 0.0
    %866 = vmatpush1.msra.mxu0 0.0
    %867 = vmatprep.subr.mxu0 0.0
    %868 = vmatpush1.msra.mxu0 0.0
    %869 = vmatprep.subr.mxu0 0.0
    %870 = vmatpush1.msra.mxu0 0.0
    %871 = vmatprep.subr.mxu0 0.0
    %872 = vmatpush1.msra.mxu0 0.0
    %873 = vmatprep.subr.mxu0 0.0
    %874 = vmatpush1.msra.mxu0 0.0
    %875 = vmatprep.subr.mxu0 0.0
    %876 = vmatpush1.msra.mxu0 0.0
    %877 = vmatprep.subr.mxu0 0.0
    %878 = vmatpush1.msra.mxu0 0.0
    %879 = vmatprep.subr.mxu0 0.0
    %880 = vmatpush1.msra.mxu0 0.0
    %881 = vmatprep.subr.mxu0 0.0
    %882 = vmatpush1.msra.mxu0 0.0
    %883 = vmatprep.subr.mxu0 0.0
    %884 = vmatpush1.msra.mxu0 0.0
    %885 = vmatprep.mubr.f32.mxu0 0.0
    %886 = vmatmul.mubr.f32.gmra.mrb[0].mxu0 %v819
    %v887 = vpop.f32.mrb[0].mxu0
    %v888 = vadd.f32 0.0, %v887
    %v889 = vpop.f32.mrb[0].mxu0
    %890 = vdwg.mxu0
    %v891 = vadd.f32 %v205, %v888
    %v892 = vxor.u32 %v891, 2147483648
    %v893 = vmul.f32 %v892, 1.442695
    %v894 = vpow.pop %v893
    %v895 = vadd.f32 %v894, 1.0
    %v896 = vrcp.pop %v895
    %v897 = vmul.f32 1.0, %v896
    %v898 = vtanh.pop %v891
    %v899 = vmul.f32 %v809, %v897
    %901 = vrot.lane.b32.xlu0 %v898, 96
    %v902 = vpop.permute.xlu0 %901
    %v904 = vmul.f32 %v897, %v902
    %906 = vrot.lane.b32.xlu0 %v904, 64
    %v907 = vpop.permute.xlu0 %906
    %v909 = vadd.f32 %v899, %v907
    %v910 = vtanh.pop %v909
    %912 = vrot.lane.b32.xlu0 %v910, 32
    %v913 = vpop.permute.xlu0 %912
    %v915 = vmul.f32 %v897, %v913
    %917 = vrot.lane.b32.xlu0 %v915, 32
    %v918 = vpop.permute.xlu0 %917
    %v919 = vsel %vm217, %v918, 0
    %921 = vmatprep.subr.mxu0 0.0
    %922 = vmatpush1.msra.mxu0 %v213
    %923 = vmatprep.subr.mxu0 0.0
    %924 = vmatpush1.msra.mxu0 %v214
    %925 = vmatprep.subr.mxu0 0.0
    %926 = vmatpush1.msra.mxu0 %v215
    %927 = vmatprep.subr.mxu0 0.0
    %928 = vmatpush1.msra.mxu0 %v216
    %929 = vmatprep.subr.mxu0 0.0
    %930 = vmatpush1.msra.mxu0 0.0
    %931 = vmatprep.subr.mxu0 0.0
    %932 = vmatpush1.msra.mxu0 0.0
    %933 = vmatprep.subr.mxu0 0.0
    %934 = vmatpush1.msra.mxu0 0.0
    %935 = vmatprep.subr.mxu0 0.0
    %936 = vmatpush1.msra.mxu0 0.0
    %937 = vmatprep.subr.mxu0 0.0
    %938 = vmatpush1.msra.mxu0 0.0
    %939 = vmatprep.subr.mxu0 0.0
    %940 = vmatpush1.msra.mxu0 0.0
    %941 = vmatprep.subr.mxu0 0.0
    %942 = vmatpush1.msra.mxu0 0.0
    %943 = vmatprep.subr.mxu0 0.0
    %944 = vmatpush1.msra.mxu0 0.0
    %945 = vmatprep.subr.mxu0 0.0
    %946 = vmatpush1.msra.mxu0 0.0
    %947 = vmatprep.subr.mxu0 0.0
    %948 = vmatpush1.msra.mxu0 0.0
    %949 = vmatprep.subr.mxu0 0.0
    %950 = vmatpush1.msra.mxu0 0.0
    %951 = vmatprep.subr.mxu0 0.0
    %952 = vmatpush1.msra.mxu0 0.0
    %953 = vmatprep.subr.mxu0 0.0
    %954 = vmatpush1.msra.mxu0 0.0
    %955 = vmatprep.subr.mxu0 0.0
    %956 = vmatpush1.msra.mxu0 0.0
    %957 = vmatprep.subr.mxu0 0.0
    %958 = vmatpush1.msra.mxu0 0.0
    %959 = vmatprep.subr.mxu0 0.0
    %960 = vmatpush1.msra.mxu0 0.0
    %961 = vmatprep.subr.mxu0 0.0
    %962 = vmatpush1.msra.mxu0 0.0
    %963 = vmatprep.subr.mxu0 0.0
    %964 = vmatpush1.msra.mxu0 0.0
    %965 = vmatprep.subr.mxu0 0.0
    %966 = vmatpush1.msra.mxu0 0.0
    %967 = vmatprep.subr.mxu0 0.0
    %968 = vmatpush1.msra.mxu0 0.0
    %969 = vmatprep.subr.mxu0 0.0
    %970 = vmatpush1.msra.mxu0 0.0
    %971 = vmatprep.subr.mxu0 0.0
    %972 = vmatpush1.msra.mxu0 0.0
    %973 = vmatprep.subr.mxu0 0.0
    %974 = vmatpush1.msra.mxu0 0.0
    %975 = vmatprep.subr.mxu0 0.0
    %976 = vmatpush1.msra.mxu0 0.0
    %977 = vmatprep.subr.mxu0 0.0
    %978 = vmatpush1.msra.mxu0 0.0
    %979 = vmatprep.subr.mxu0 0.0
    %980 = vmatpush1.msra.mxu0 0.0
    %981 = vmatprep.subr.mxu0 0.0
    %982 = vmatpush1.msra.mxu0 0.0
    %983 = vmatprep.subr.mxu0 0.0
    %984 = vmatpush1.msra.mxu0 0.0
    %985 = vmatprep.mubr.f32.mxu0 0.0
    %986 = vmatmul.mubr.f32.gmra.mrb[0].mxu0 %v919
    %v987 = vpop.f32.mrb[0].mxu0
    %v988 = vadd.f32 0.0, %v987
    %v989 = vpop.f32.mrb[0].mxu0
    %990 = vdwg.mxu0
    %v991 = vadd.f32 %v210, %v988
    %v992 = vxor.u32 %v991, 2147483648
    %v993 = vmul.f32 %v992, 1.442695
    %v994 = vpow.pop %v993
    %v995 = vadd.f32 %v994, 1.0
    %v996 = vrcp.pop %v995
    %v997 = vmul.f32 1.0, %v996
    %v998 = vtanh.pop %v991
    %v999 = vmul.f32 %v909, %v997
    %1001 = vrot.lane.b32.xlu0 %v998, 96
    %v1002 = vpop.permute.xlu0 %1001
    %v1004 = vmul.f32 %v997, %v1002
    %1006 = vrot.lane.b32.xlu0 %v1004, 64
    %v1007 = vpop.permute.xlu0 %1006
    %v1009 = vadd.f32 %v999, %v1007
    %v1010 = vtanh.pop %v1009
    %1012 = vrot.lane.b32.xlu0 %v1010, 32
    %v1013 = vpop.permute.xlu0 %1012
    %v1015 = vmul.f32 %v997, %v1013
    %v1016 = vld [vmem:[%s4] sm:$0x1]
    %s1017 = sld [smem:[#allocation2]]
    %v1018 = vstv %s1017
    %1020 = vrot.lane.b32.xlu0 %v1015, 32
    %v1021 = vpop.permute.xlu0 %1020
    %v1023 = vsel %vm217, %v1016, 0
    %v1025 = vsel %vm217, %v1021, 0
    %1027 = vmatprep.subr.mxu0 0.0
    %1028 = vmatpush1.xpose.msra.mxu0 %v1025
    %1029 = vmatprep.subr.mxu0 0.0
    %1030 = vmatpush1.xpose.msra.mxu0 0.0
    %1031 = vmatprep.subr.mxu0 0.0
    %1032 = vmatpush1.xpose.msra.mxu0 0.0
    %1033 = vmatprep.subr.mxu0 0.0
    %1034 = vmatpush1.xpose.msra.mxu0 0.0
    %1035 = vmatprep.subr.mxu0 0.0
    %1036 = vmatpush1.xpose.msra.mxu0 0.0
    %1037 = vmatprep.subr.mxu0 0.0
    %1038 = vmatpush1.xpose.msra.mxu0 0.0
    %1039 = vmatprep.subr.mxu0 0.0
    %1040 = vmatpush1.xpose.msra.mxu0 0.0
    %1041 = vmatprep.subr.mxu0 0.0
    %1042 = vmatpush1.xpose.msra.mxu0 0.0
    %1043 = vmatprep.subr.mxu0 0.0
    %1044 = vmatpush1.xpose.msra.mxu0 0.0
    %1045 = vmatprep.subr.mxu0 0.0
    %1046 = vmatpush1.xpose.msra.mxu0 0.0
    %1047 = vmatprep.subr.mxu0 0.0
    %1048 = vmatpush1.xpose.msra.mxu0 0.0
    %1049 = vmatprep.subr.mxu0 0.0
    %1050 = vmatpush1.xpose.msra.mxu0 0.0
    %1051 = vmatprep.subr.mxu0 0.0
    %1052 = vmatpush1.xpose.msra.mxu0 0.0
    %1053 = vmatprep.subr.mxu0 0.0
    %1054 = vmatpush1.xpose.msra.mxu0 0.0
    %1055 = vmatprep.subr.mxu0 0.0
    %1056 = vmatpush1.xpose.msra.mxu0 0.0
    %1057 = vmatprep.subr.mxu0 0.0
    %1058 = vmatpush1.xpose.msra.mxu0 0.0
    %1059 = vmatprep.subr.mxu0 0.0
    %1060 = vmatpush1.xpose.msra.mxu0 0.0
    %1061 = vmatprep.subr.mxu0 0.0
    %1062 = vmatpush1.xpose.msra.mxu0 0.0
    %1063 = vmatprep.subr.mxu0 0.0
    %1064 = vmatpush1.xpose.msra.mxu0 0.0
    %1065 = vmatprep.subr.mxu0 0.0
    %1066 = vmatpush1.xpose.msra.mxu0 0.0
    %1067 = vmatprep.subr.mxu0 0.0
    %1068 = vmatpush1.xpose.msra.mxu0 0.0
    %1069 = vmatprep.subr.mxu0 0.0
    %1070 = vmatpush1.xpose.msra.mxu0 0.0
    %1071 = vmatprep.subr.mxu0 0.0
    %1072 = vmatpush1.xpose.msra.mxu0 0.0
    %1073 = vmatprep.subr.mxu0 0.0
    %1074 = vmatpush1.xpose.msra.mxu0 0.0
    %1075 = vmatprep.subr.mxu0 0.0
    %1076 = vmatpush1.xpose.msra.mxu0 0.0
    %1077 = vmatprep.subr.mxu0 0.0
    %1078 = vmatpush1.xpose.msra.mxu0 0.0
    %1079 = vmatprep.subr.mxu0 0.0
    %1080 = vmatpush1.xpose.msra.mxu0 0.0
    %1081 = vmatprep.subr.mxu0 0.0
    %1082 = vmatpush1.xpose.msra.mxu0 0.0
    %1083 = vmatprep.subr.mxu0 0.0
    %1084 = vmatpush1.xpose.msra.mxu0 0.0
    %1085 = vmatprep.subr.mxu0 0.0
    %1086 = vmatpush1.xpose.msra.mxu0 0.0
    %1087 = vmatprep.subr.mxu0 0.0
    %1088 = vmatpush1.xpose.msra.mxu0 0.0
    %1089 = vmatprep.subr.mxu0 0.0
    %1090 = vmatpush1.xpose.msra.mxu0 0.0
    %1091 = vmatprep.mubr.f32.mxu0 0.0
    %1092 = vmatmul.mubr.f32.gmra.mrb[0].mxu0 %v1023
    %v1093 = vpop.f32.mrb[0].mxu0
    %v1094 = vadd.f32 %v1018, %v1093
    %v1095 = vpop.f32.mrb[0].mxu0
    %1096 = vdwg.mxu0
    %vm1097 = vcmask 57344
    %1098 = vst.msk [vmem:[#allocation9] sm:$0x1] %vm1097, %v1094
    // Predicated region
    $region38: #{tpu_custom_call.1} parent=1 // pred_check
      _
    $region39: #{tpu_custom_call.1} parent=1 // pred_check_branch
      %1100 = sbr.rel (0) target = $region41
    $region40: #{tpu_custom_call.1} parent=1 // pred_region
      %s1102 = ssub.s32 16, 16
      %1103 = vsyncadd [#allocation5], %s1102
      %s1105 = sshll.u32 [#allocation9], 4
      %s1106 = int_to_ptr.vmem [resolvable:$true] %s1105
      %1108 = dma.vmem_to_hbm [thread:$0]  %s1106, 16, %s6, [#allocation5]
    $region41: #{tpu_custom_call.1} parent=1 // pred_fallthru
      _
    // Predicated region
    $region42: #{tpu_custom_call.1} parent=1 // pred_check
      _
    $region43: #{tpu_custom_call.1} parent=1 // pred_check_branch
      %1110 = sbr.rel (0) target = $region45
    $region44: #{tpu_custom_call.1} parent=1 // pred_region
      %1111 = dma.done [#allocation5], 16
    $region45: #{tpu_custom_call.1} parent=1 // pred_fallthru
      _
    %1112 = vsyncpa [#allocation4], 1
    %1113 = vsyncpa [#allocation7], 1
    %1114 = vsyncpa [#allocation5], 1

</llo_original>
